<compile_context>
chip_gen: v5e
topology: v5e:2x2
jax: 0.10.0
libtpu: 0.0.40
codegen_flags: <defaults>
</compile_context>

<pallas_src>
import functools

import jax
import jax.numpy as jnp
from jax.experimental import pallas as pl
from jax.experimental.pallas import tpu as pltpu


# ----------------------------------------------------------------------------- kernel
def marc_linear_kernel(x_ref, w_ref, a_ref, c_ref, out_ref):
    # x_ref: (tm, tk) bf16    w_ref: (tk, tn) bf16 (pre-transposed weight)
    # a_ref, c_ref: (1, tn) f32    out_ref: (tm, tn) f32 (resident across k)
    @pl.when(pl.program_id(2) == 0)
    def _():
        out_ref[...] = jnp.zeros_like(out_ref)

    # Plain MXU contraction, f32 accumulation directly into the resident out tile.
    out_ref[...] += jnp.dot(x_ref[...], w_ref[...],
                            preferred_element_type=jnp.float32)

    @pl.when(pl.program_id(2) == pl.num_programs(2) - 1)
    def _():
        # Exact f32 epilogue: out = a * (x @ W.T) + (a*bias + b*w_norm)
        out_ref[...] = a_ref[...] * out_ref[...] + c_ref[...]


# ----------------------------------------------------------------------------- helpers
def _round_up(v, m):
    return (v + m - 1) // m * m


def _pick_nk_tile(dim, t_default):
    """Pick an N/K tile: lane-aligned, multiple of 256 when the dim allows it."""
    aligned = _round_up(dim, 128)
    if aligned < 256:
        return aligned                       # tiny dim: single 128-wide block
    # v6e/v7x MXUs are 256x256: keep N/K tiles multiples of 256.
    return min(_round_up(aligned, 256), _round_up(t_default, 256))


def prepare_marc_params(weight, bias, a, b, *, tn, tk):
    """One-time (cacheable) weight / epilogue preparation.

    Returns (w_t, a_p, c_p):
      w_t: (Dp, Cp) bf16 pre-transposed, zero-padded weight
      a_p: (1, Cp)  f32 scale
      c_p: (1, Cp)  f32 fused constant  a*bias + b*||W||_2
    """
    C, D = weight.shape
    Cp, Dp = _round_up(C, tn), _round_up(D, tk)

    w_f32 = jnp.asarray(weight, jnp.float32)
    # Single pass over W: row-norm reduction fused with the bf16 cast by XLA.
    w_norm = jnp.sqrt(jnp.sum(w_f32 * w_f32, axis=1)).reshape(1, C)
    w_t = w_f32.astype(jnp.bfloat16).T                      # (D, C), MXU-native layout
    if (Dp, Cp) != (D, C):
        w_t = jnp.zeros((Dp, Cp), jnp.bfloat16).at[:D, :C].set(w_t)

    a2 = jnp.asarray(a, jnp.float32).reshape(1, C)
    b2 = jnp.asarray(b, jnp.float32).reshape(1, C)
    bias2 = jnp.asarray(bias, jnp.float32).reshape(1, C)
    fused = a2 * bias2 + b2 * w_norm                        # exact f32 epilogue constant
    if Cp != C:
        a2 = jnp.zeros((1, Cp), jnp.float32).at[:, :C].set(a2)
        fused = jnp.zeros((1, Cp), jnp.float32).at[:, :C].set(fused)
    return w_t, a2, fused


# ----------------------------------------------------------------------------- forward
@functools.partial(jax.jit, static_argnames=("C", "tm", "tn", "tk"))
def _marc_forward(x, w_t, a_p, c_p, *, C, tm, tn, tk):
    B, D = x.shape
    Dp, Cp = w_t.shape

    tm = min(tm, _round_up(B, 8))
    Bp = _round_up(B, tm)

    # Cast x to bf16 for the MXU; only materialize a padded copy if needed.
    x_bf = x.astype(jnp.bfloat16)
    if (Bp, Dp) != (B, D):
        x_bf = jnp.zeros((Bp, Dp), jnp.bfloat16).at[:B, :D].set(x_bf)

    grid = (Bp // tm, Cp // tn, Dp // tk)

    # Tiny-batch regime: deepen weight buffering (pure weight streaming).
    use_deep_w = (tm <= 128) and (grid[1] * grid[2] >= 3)
    w_bufs = 3 if use_deep_w else 2
    w_spec_kwargs = {"pipeline_mode": pl.Buffered(3)} if use_deep_w else {}

    # VMEM budget: x + w double/triple-buffered bf16, out f32 double-buffered,
    # plus the tiny (1, tn) epilogue vectors.  Raise v5e's 16 MiB scoped
    # default; stay well under v7x's 64 MiB physical VMEM.
    est_vmem = (2 * tm * tk * 2 + w_bufs * tk * tn * 2 + 2 * tm * tn * 4
                + 2 * 2 * tn * 4 * 2)
    vmem_limit = int(min(max(4 * est_vmem, 32 << 20), 48 << 20))

    out_p = pl.pallas_call(
        marc_linear_kernel,
        out_shape=jax.ShapeDtypeStruct((Bp, Cp), jnp.float32),
        grid_spec=pltpu.PrefetchScalarGridSpec(
            num_scalar_prefetch=0,
            grid=grid,
            in_specs=[
                pl.BlockSpec((tm, tk), lambda i, j, k: (i, k)),                 # x tile
                pl.BlockSpec((tk, tn), lambda i, j, k: (k, j), **w_spec_kwargs),  # W.T tile
                pl.BlockSpec((1, tn), lambda i, j, k: (0, j)),                  # a
                pl.BlockSpec((1, tn), lambda i, j, k: (0, j)),                  # fused const
            ],
            out_specs=pl.BlockSpec((tm, tn), lambda i, j, k: (i, j)),
        ),
        compiler_params=pltpu.CompilerParams(
            dimension_semantics=("parallel", "parallel", "arbitrary"),
            vmem_limit_bytes=vmem_limit),
    )(x_bf, w_t, a_p, c_p)

    if (Bp, Cp) != (B, C):
        out_p = out_p[:B, :C]
    return out_p


def make_marc_linear(weight, bias, a, b, *, tm=512, tn=512, tk=1024):
    """Build a cached MARCLinear forward: weight prep happens once, not per call."""
    C, D = weight.shape
    tn = _pick_nk_tile(C, tn)
    tk = _pick_nk_tile(D, tk)
    # v7x megacore: if the class dim fits in one 512-wide block, split it so the
    # 'parallel' j axis has >= 2 blocks (tn stays a multiple of 256).
    if _round_up(C, tn) // tn == 1 and tn >= 512:
        tn //= 2

    w_t, a_p, c_p = prepare_marc_params(weight, bias, a, b, tn=tn, tk=tk)

    def forward(x, *args):
        out = _marc_forward(x, w_t, a_p, c_p, C=C, tm=tm, tn=tn, tk=tk)
        return out, None

    return forward


def marc_linear(x, weight, bias, a, b, *, tm=512, tn=512, tk=1024):
    """One-shot convenience wrapper (prefer make_marc_linear to cache weight prep)."""
    return make_marc_linear(weight, bias, a, b, tm=tm, tn=tn, tk=tk)(x)


# ----------------------------------------------------------------------------- reference
def marc_linear_ref(x, weight, bias, a, b):
    logit_before = x @ weight.T + bias.reshape(1, -1)
    w_norm = jnp.sqrt(jnp.sum(weight * weight, axis=1))
    return a.reshape(1, -1) * logit_before + b.reshape(1, -1) * w_norm


if __name__ == "__main__":
    key = jax.random.PRNGKey(0)
    k_x, k_w, k_bias, k_a, k_b = jax.random.split(key, 5)

    batch = 4
    in_features = 32
    out_features = 16

    x = jax.random.normal(k_x, (batch, in_features), dtype=jnp.float32)
    # nn.Linear parameter shapes: weight (out_features, in_features), bias (out_features,)
    weight = jax.random.normal(k_w, (out_features, in_features), dtype=jnp.float32) * 0.1
    bias = jax.random.normal(k_bias, (out_features,), dtype=jnp.float32) * 0.1
    # Module inits a=ones(1,C), b=zeros(1,C); perturb so the b*w_norm path is exercised.
    a = jnp.ones((1, out_features), jnp.float32) + 0.01 * jax.random.normal(
        k_a, (1, out_features), dtype=jnp.float32)
    b = jnp.zeros((1, out_features), jnp.float32) + 0.01 * jax.random.normal(
        k_b, (1, out_features), dtype=jnp.float32)

    fwd = make_marc_linear(weight, bias, a, b)      # weight prep cached here
    out, none_out = fwd(x)
    out = jax.block_until_ready(out)

    ref = marc_linear_ref(x, weight, bias, a, b)
    assert none_out is None
    assert out.shape == (batch, out_features)
    # bf16 MXU inputs (f32 accumulation) -> compare against f32 ref with a
    # tolerance matching bf16 input rounding.
    assert jnp.allclose(out, ref, atol=5e-2, rtol=5e-2), (
        f"max abs diff {jnp.max(jnp.abs(out - ref))}")

    print("KERNEL_OK")
</pallas_src>

<mosaic_0001>
module attributes {stable_mosaic.version = 11 : i64} {
  func.func @marc_linear_kernel(%arg0: i32, %arg1: i32, %arg2: i32, %arg3: memref<8x128xbf16, #tpu.memory_space<vmem>>, %arg4: memref<128x128xbf16, #tpu.memory_space<vmem>>, %arg5: memref<1x128xf32, #tpu.memory_space<vmem>>, %arg6: memref<1x128xf32, #tpu.memory_space<vmem>>, %arg7: memref<8x128xf32, #tpu.memory_space<vmem>>) attributes {dimension_semantics = [#tpu.dimension_semantics<parallel>, #tpu.dimension_semantics<parallel>, #tpu.dimension_semantics<arbitrary>], iteration_bounds = array<i64: 1, 1, 1>, scalar_prefetch = 0 : i64, scratch_operands = 0 : i64, tpu.core_type = #tpu.core_type<tc>, window_params = [{transform_indices = @transform_0, window_bounds = array<i64: 8, 128>}, {transform_indices = @transform_1, window_bounds = array<i64: 128, 128>}, {transform_indices = @transform_2, window_bounds = array<i64: 1, 128>}, {transform_indices = @transform_3, window_bounds = array<i64: 1, 128>}, {transform_indices = @transform_4, window_bounds = array<i64: 8, 128>}]} {
    %c0_i32 = arith.constant 0 : i32
    %0 = arith.cmpi eq, %arg2, %c0_i32 : i32
    %1 = arith.extui %0 : i1 to i32
    %c0_i32_0 = arith.constant 0 : i32
    %2 = arith.cmpi ne, %1, %c0_i32_0 : i32
    scf.if %2 {
      %cst_10 = arith.constant 0.000000e+00 : f32
      %12 = vector.broadcast %cst_10 : f32 to vector<8x128xf32>
      %c0_11 = arith.constant 0 : index
      %c0_12 = arith.constant 0 : index
      %13 = vector.load %arg7[%c0_11, %c0_12] : memref<8x128xf32, #tpu.memory_space<vmem>>, vector<8x128xf32>
      tpu.vector_store %arg7[%c0_11, %c0_12], %12 {strides = array<i32>} : memref<8x128xf32, #tpu.memory_space<vmem>>, vector<8x128xf32>,
    } else {
    }
    %c0 = arith.constant 0 : index
    %c0_1 = arith.constant 0 : index
    %3 = vector.load %arg7[%c0, %c0_1] : memref<8x128xf32, #tpu.memory_space<vmem>>, vector<8x128xf32>
    %c0_2 = arith.constant 0 : index
    %c0_3 = arith.constant 0 : index
    %4 = vector.load %arg3[%c0_2, %c0_3] : memref<8x128xbf16, #tpu.memory_space<vmem>>, vector<8x128xbf16>
    %c0_4 = arith.constant 0 : index
    %c0_5 = arith.constant 0 : index
    %5 = vector.load %arg4[%c0_4, %c0_5] : memref<128x128xbf16, #tpu.memory_space<vmem>>, vector<128x128xbf16>
    %cst = arith.constant dense<0.000000e+00> : vector<8x128xf32>
    %6 = tpu.matmul %4, %5, %cst {dimension_numbers = #tpu.dot_dimension_numbers<[1], [0], [0], [1], [0, 0, 1, 1], [], []>} : vector<8x128xbf16>, vector<128x128xbf16>, vector<8x128xf32> -> vector<8x128xf32>
    %7 = arith.addf %3, %6 : vector<8x128xf32>
    %c0_6 = arith.constant 0 : index
    %c0_7 = arith.constant 0 : index
    %8 = vector.load %arg7[%c0_6, %c0_7] : memref<8x128xf32, #tpu.memory_space<vmem>>, vector<8x128xf32>
    tpu.vector_store %arg7[%c0_6, %c0_7], %7 {strides = array<i32>} : memref<8x128xf32, #tpu.memory_space<vmem>>, vector<8x128xf32>,
    %c0_i32_8 = arith.constant 0 : i32
    %9 = arith.cmpi eq, %arg2, %c0_i32_8 : i32
    %10 = arith.extui %9 : i1 to i32
    %c0_i32_9 = arith.constant 0 : i32
    %11 = arith.cmpi ne, %10, %c0_i32_9 : i32
    scf.if %11 {
      %c0_10 = arith.constant 0 : index
      %c0_11 = arith.constant 0 : index
      %12 = vector.load %arg5[%c0_10, %c0_11] : memref<1x128xf32, #tpu.memory_space<vmem>>, vector<1x128xf32>
      %c0_12 = arith.constant 0 : index
      %c0_13 = arith.constant 0 : index
      %13 = vector.load %arg7[%c0_12, %c0_13] : memref<8x128xf32, #tpu.memory_space<vmem>>, vector<8x128xf32>
      %14 = vector.broadcast %12 : vector<1x128xf32> to vector<8x128xf32>
      %15 = arith.mulf %14, %13 : vector<8x128xf32>
      %c0_14 = arith.constant 0 : index
      %c0_15 = arith.constant 0 : index
      %16 = vector.load %arg6[%c0_14, %c0_15] : memref<1x128xf32, #tpu.memory_space<vmem>>, vector<1x128xf32>
      %17 = vector.broadcast %16 : vector<1x128xf32> to vector<8x128xf32>
      %18 = arith.addf %15, %17 : vector<8x128xf32>
      %c0_16 = arith.constant 0 : index
      %c0_17 = arith.constant 0 : index
      %19 = vector.load %arg7[%c0_16, %c0_17] : memref<8x128xf32, #tpu.memory_space<vmem>>, vector<8x128xf32>
      tpu.vector_store %arg7[%c0_16, %c0_17], %18 {strides = array<i32>} : memref<8x128xf32, #tpu.memory_space<vmem>>, vector<8x128xf32>,
    } else {
    }
    return
  }
  func.func @transform_0(%arg0: i32, %arg1: i32, %arg2: i32) -> (i32, i32) {
    %c0_i32 = arith.constant 0 : i32
    return %arg0, %arg2 : i32, i32
  }
  func.func @transform_1(%arg0: i32, %arg1: i32, %arg2: i32) -> (i32, i32) {
    %c0_i32 = arith.constant 0 : i32
    return %arg2, %arg1 : i32, i32
  }
  func.func @transform_2(%arg0: i32, %arg1: i32, %arg2: i32) -> (i32, i32) {
    %c0_i32 = arith.constant 0 : i32
    %c0_i32_0 = arith.constant 0 : i32
    return %c0_i32, %arg1 : i32, i32
  }
  func.func @transform_3(%arg0: i32, %arg1: i32, %arg2: i32) -> (i32, i32) {
    %c0_i32 = arith.constant 0 : i32
    %c0_i32_0 = arith.constant 0 : i32
    return %c0_i32, %arg1 : i32, i32
  }
  func.func @transform_4(%arg0: i32, %arg1: i32, %arg2: i32) -> (i32, i32) {
    %c0_i32 = arith.constant 0 : i32
    return %arg0, %arg1 : i32, i32
  }
}

</mosaic_0001>

<llo_original>
// kernel: _marc_forward.1
$region0: #{_marc_forward.1}
  #allocation0 [shape = 'u32[]', space=smem, size = 0x4, offset = 0x4, fixed_abs, tag = 'smem constant byte address 0x4 - core index']
  #allocation1 [shape = 'u32[72,128]{1,0:T(1,128)}', space=vmem, size = 0x9000, scoped, tag = 'internal scratch']
  %s0 = inlined_call_operand.vmem [shape: bf16[8,128], index: 0, kind: input, shape index: {}]
  %s1 = inlined_call_operand.hbm [shape: bf16[128,128], index: 1, kind: input, shape index: {}]
  %s2 = inlined_call_operand.vmem [shape: f32[1,128], index: 2, kind: input, shape index: {}]
  %s3 = inlined_call_operand.vmem [shape: f32[1,128], index: 3, kind: input, shape index: {}]
  %s4 = inlined_call_operand.vmem [shape: f32[8,128], index: 4, kind: output, shape index: {}]
  %s5 = sld [smem:[#allocation0]]
  $region38: #{_marc_forward.1} parent=0
    _
  %s7 = ssub.s32 1, %s5
  %s8 = scalar_select 0, %s7, %s5
  $region1: #{_marc_forward.1} parent=0
    #allocation2 [shape = 'u8[32768]{0}', space=vmem, size = 0x8000, scoped, tag = 'input window, operand 1, single buffered']
    #allocation3 [shape = 's32[1]{0}', space=sflag, size = 0x4, scoped, tag = 'scoped memory for _marc_forward.1']
    %9 = vsyncpa [#allocation3], 0
    // Predicated region
    $region2: #{_marc_forward.1} parent=1 // pred_check
      _
    $region3: #{_marc_forward.1} parent=1 // pred_check_branch
      %11 = sbr.rel (0) target = $region5
    $region4: #{_marc_forward.1} parent=1 // pred_region
      _
    $region5: #{_marc_forward.1} parent=1 // pred_fallthru
      _
    // Predicated region
    $region6: #{_marc_forward.1} parent=1 // pred_check
      _
    $region7: #{_marc_forward.1} parent=1 // pred_check_branch
      %13 = sbr.rel (0) target = $region9
    $region8: #{_marc_forward.1} parent=1 // pred_region
      %15 = vsyncadd [#allocation3], 0
      %s16 = sshll.u32 %s1, 4
      %s17 = int_to_ptr.hbm [resolvable:$true] %s16
      %s18 = sshll.u32 [#allocation2], 4
      %s19 = int_to_ptr.vmem [resolvable:$true] %s18
      %24 = dma.hbm_to_vmem [thread:$0]  %s17, 1024, %s19, [#allocation3], 64, 64, 4
    $region9: #{_marc_forward.1} parent=1 // pred_fallthru
      _
    // Predicated region
    $region10: #{_marc_forward.1} parent=1 // pred_check
      _
    $region11: #{_marc_forward.1} parent=1 // pred_check_branch
      %26 = sbr.rel (0) target = $region13
    $region12: #{_marc_forward.1} parent=1 // pred_region
      _
    $region13: #{_marc_forward.1} parent=1 // pred_fallthru
      _
    // Predicated region
    $region14: #{_marc_forward.1} parent=1 // pred_check
      _
    $region15: #{_marc_forward.1} parent=1 // pred_check_branch
      %28 = sbr.rel (0) target = $region17
    $region16: #{_marc_forward.1} parent=1 // pred_region
      _
    $region17: #{_marc_forward.1} parent=1 // pred_fallthru
      _
    // Predicated region
    $region18: #{_marc_forward.1} parent=1 // pred_check
      _
    $region19: #{_marc_forward.1} parent=1 // pred_check_branch
      %30 = sbr.rel (0) target = $region21
    $region20: #{_marc_forward.1} parent=1 // pred_region
      %32 = dma.done [#allocation3], 1024
    $region21: #{_marc_forward.1} parent=1 // pred_fallthru
      _
    %p33 = scmp.eq.s32.totalorder 0, 0
    // Predicated region
    $region22: #{_marc_forward.1} parent=1 // pred_check
      %p34 = pneg %p33
    $region23: #{_marc_forward.1} parent=1 // pred_check_branch
      %36 = sbr.rel (%p34) target = $region25
    $region24: #{_marc_forward.1} parent=1 // pred_region
      %37 = vst [vmem:[%s4] sm:$0xff] 0.0
    $region25: #{_marc_forward.1} parent=1 // pred_fallthru
      _
    %v38 = vld [vmem:[%s4] sm:$0xff]
    %v39 = vld [vmem:[%s0] sm:$0xf]
    %v40 = vld [vmem:[#allocation2] sm:$0xf]
    %v41 = vld [vmem:[#allocation2 + $0x4] sm:$0xf]
    %v42 = vld [vmem:[#allocation2 + $0x8] sm:$0xf]
    %v43 = vld [vmem:[#allocation2 + $0xc] sm:$0xf]
    %v44 = vld [vmem:[#allocation2 + $0x10] sm:$0xf]
    %v45 = vld [vmem:[#allocation2 + $0x14] sm:$0xf]
    %v46 = vld [vmem:[#allocation2 + $0x18] sm:$0xf]
    %v47 = vld [vmem:[#allocation2 + $0x1c] sm:$0xf]
    %v48 = vld [vmem:[#allocation2 + $0x20] sm:$0xf]
    %v49 = vld [vmem:[#allocation2 + $0x24] sm:$0xf]
    %v50 = vld [vmem:[#allocation2 + $0x28] sm:$0xf]
    %v51 = vld [vmem:[#allocation2 + $0x2c] sm:$0xf]
    %v52 = vld [vmem:[#allocation2 + $0x30] sm:$0xf]
    %v53 = vld [vmem:[#allocation2 + $0x34] sm:$0xf]
    %v54 = vld [vmem:[#allocation2 + $0x38] sm:$0xf]
    %v55 = vld [vmem:[#allocation2 + $0x3c] sm:$0xf]
    %v72 = vunpack.c.l.b16 %v40
    %v73 = vunpack.c.l.b16 %v41
    %v74 = vunpack.c.l.b16 %v42
    %v75 = vunpack.c.l.b16 %v43
    %v76 = vunpack.c.l.b16 %v44
    %v77 = vunpack.c.l.b16 %v45
    %v78 = vunpack.c.l.b16 %v46
    %v79 = vunpack.c.l.b16 %v47
    %v80 = vunpack.c.l.b16 %v48
    %v81 = vunpack.c.l.b16 %v49
    %v82 = vunpack.c.l.b16 %v50
    %v83 = vunpack.c.l.b16 %v51
    %v84 = vunpack.c.l.b16 %v52
    %v85 = vunpack.c.l.b16 %v53
    %v86 = vunpack.c.l.b16 %v54
    %v87 = vunpack.c.l.b16 %v55
    %v88 = vpack.c.b16 %v73, %v72
    %v89 = vpack.c.b16 %v75, %v74
    %v90 = vpack.c.b16 %v77, %v76
    %v91 = vpack.c.b16 %v79, %v78
    %v92 = vpack.c.b16 %v81, %v80
    %v93 = vpack.c.b16 %v83, %v82
    %v94 = vpack.c.b16 %v85, %v84
    %v95 = vpack.c.b16 %v87, %v86
    %104 = vmatpush.bf16.msra.mxu0 %v95
    %105 = vmatpush.bf16.msra.mxu0 %v94
    %106 = vmatpush.bf16.msra.mxu0 %v93
    %107 = vmatpush.bf16.msra.mxu0 %v92
    %108 = vmatpush.bf16.msra.mxu0 %v91
    %109 = vmatpush.bf16.msra.mxu0 %v90
    %110 = vmatpush.bf16.msra.mxu0 %v89
    %111 = vmatpush.bf16.msra.mxu0 %v88
    %112 = vmatmul.bf16.gmra.mxu0 %v39
    %v113 = vpop.f32.mrf.mxu0
    %v114 = vadd.f32 0.0, %v113
    %v115 = vpop.f32.mrf.mxu0
    %116 = vdwg.mxu0
    %v117 = vadd.f32 %v38, %v114
    %118 = vst [vmem:[%s4] sm:$0xff] %v117
    // Predicated region
    $region26: #{_marc_forward.1} parent=1 // pred_check
      %p119 = pneg %p33
    $region27: #{_marc_forward.1} parent=1 // pred_check_branch
      %121 = sbr.rel (%p119) target = $region29
    $region28: #{_marc_forward.1} parent=1 // pred_region
      %v122 = vld [vmem:[%s2] sm:$0x1]
      %v123 = vld [vmem:[%s4] sm:$0xff]
      %v125 = vperm.slane %v122, 0
      %v127 = vmul.f32 %v125, %v123
      %v128 = vld [vmem:[%s3] sm:$0x1]
      %v130 = vperm.slane %v128, 0
      %v132 = vadd.f32 %v127, %v130
      %133 = vst [vmem:[%s4] sm:$0xff] %v132
    $region29: #{_marc_forward.1} parent=1 // pred_fallthru
      _
    // Predicated region
    $region30: #{_marc_forward.1} parent=1 // pred_check
      _
    $region31: #{_marc_forward.1} parent=1 // pred_check_branch
      %135 = sbr.rel (0) target = $region33
    $region32: #{_marc_forward.1} parent=1 // pred_region
      _
    $region33: #{_marc_forward.1} parent=1 // pred_fallthru
      _
    // Predicated region
    $region34: #{_marc_forward.1} parent=1 // pred_check
      _
    $region35: #{_marc_forward.1} parent=1 // pred_check_branch
      %137 = sbr.rel (0) target = $region37
    $region36: #{_marc_forward.1} parent=1 // pred_region
      _
    $region37: #{_marc_forward.1} parent=1 // pred_fallthru
      _
    %138 = vsyncpa [#allocation3], 1

</llo_original>
